<compile_context>
chip_gen: v6e
topology: v6e:2x2x1
jax: 0.10.0
libtpu: 0.0.40
codegen_flags: <defaults>
</compile_context>

<pallas_src>
import jax
import jax.numpy as jnp
from jax.experimental import pallas as pl
from jax.experimental.pallas import tpu as pltpu

INPUT_LEN = 40
DIMS = [INPUT_LEN, 256, 128, 64, 32, 1]
OUT_PAD = 8  # final output column padded 1 -> 8 lanes (minimum legal full-dim block)


def _round_up(x, m):
    return (x + m - 1) // m * m


def fcn_kernel(x_ref,
               w1_ref, b1_ref,
               w2_ref, b2_ref,
               w3_ref, b3_ref,
               w4_ref, b4_ref,
               w5_ref, b5_ref,
               o_ref):
    """relu(x@W1+b1) ... relu(.@W4+b4), final linear (no relu).

    Matmul inputs use the weights' dtype (f32 or bf16); accumulation, bias add
    and ReLU stay in f32 (v5e VPU/EUP have no bf16 path).
    """
    cdt = w1_ref.dtype
    h = x_ref[...].astype(cdt)
    h = jnp.maximum(
        jnp.dot(h, w1_ref[...], preferred_element_type=jnp.float32) + b1_ref[...], 0.0)
    h = jnp.maximum(
        jnp.dot(h.astype(cdt), w2_ref[...], preferred_element_type=jnp.float32) + b2_ref[...], 0.0)
    h = jnp.maximum(
        jnp.dot(h.astype(cdt), w3_ref[...], preferred_element_type=jnp.float32) + b3_ref[...], 0.0)
    h = jnp.maximum(
        jnp.dot(h.astype(cdt), w4_ref[...], preferred_element_type=jnp.float32) + b4_ref[...], 0.0)
    o_ref[...] = (
        jnp.dot(h.astype(cdt), w5_ref[...], preferred_element_type=jnp.float32) + b5_ref[...])


def _prep_params(params, compute_dtype):
    """Cast weights to compute dtype; pad only the final layer's out-dim to OUT_PAD."""
    prepped = []
    n = len(params)
    for i, (w, b) in enumerate(params):
        w = w.astype(compute_dtype)
        b = b.astype(jnp.float32)  # bias/epilogue always f32
        if i == n - 1:
            w = jnp.pad(w, ((0, 0), (0, OUT_PAD - w.shape[1])))
            b = jnp.pad(b, ((0, 0), (0, OUT_PAD - b.shape[1])))
        prepped.append((w, b))
    return prepped


def fcn_forward(x, params, *, tile_b=2048, use_bf16=True):
    """x: [B, INPUT_LEN] float32; params: list of (W_t [in,out], b [1,out]).

    Returns [B, 1] float32.
    """
    B = x.shape[0]
    compute_dtype = jnp.bfloat16 if use_bf16 else jnp.float32

    # Batch tile: multiple of 8 sublanes; capped so any batch bigger than one
    # tile yields >= 2 grid steps (so "parallel" can shard across v7x's 2 TCs).
    half_b = _round_up((B + 1) // 2, 8)
    tile_b = max(8, min(tile_b, half_b))
    b_pad = _round_up(B, tile_b)

    if b_pad != B:
        # Batch-only zero pad (no feature pad, no dtype change of x).
        x = jnp.pad(x, ((0, b_pad - B), (0, 0)))

    prepped = _prep_params(params, compute_dtype)
    flat = []
    for w, b in prepped:
        flat.extend([w, b])

    grid = (b_pad // tile_b,)

    # x keeps its natural 40-wide last dim (== full array dim); cast happens in-kernel.
    x_spec = pl.BlockSpec((tile_b, INPUT_LEN), lambda i: (i, 0))
    # Narrow, lane-minimal output: only 8 lanes written back to HBM per row.
    out_spec = pl.BlockSpec((tile_b, OUT_PAD), lambda i: (i, 0))
    # Weights/biases: constant index map -> DMA'd once, resident in VMEM.
    const_specs = []
    for w, b in prepped:
        const_specs.append(pl.BlockSpec(w.shape, lambda i: (0, 0)))
        const_specs.append(pl.BlockSpec(b.shape, lambda i: (0, 0)))

    flops = 2 * b_pad * sum(DIMS[i] * DIMS[i + 1] for i in range(len(DIMS) - 1))
    weight_bytes = sum(int(a.size) * a.dtype.itemsize for a in flat)
    act_bytes = b_pad * (INPUT_LEN * x.dtype.itemsize + OUT_PAD * 4)
    cost = pl.CostEstimate(flops=int(flops), transcendentals=0,
                           bytes_accessed=int(weight_bytes + act_bytes))

    out = pl.pallas_call(
        fcn_kernel,
        out_shape=jax.ShapeDtypeStruct((b_pad, OUT_PAD), jnp.float32),
        grid=grid,
        in_specs=[x_spec] + const_specs,
        out_specs=out_spec,
        compiler_params=pltpu.CompilerParams(
            dimension_semantics=("parallel",),
            vmem_limit_bytes=32 * 1024 * 1024,
        ),
        cost_estimate=cost,
    )(x, *flat)

    return out[:B, :DIMS[-1]]


def init_params(key):
    """Deterministic init mimicking nn.Linear's U(-1/sqrt(fan_in), 1/sqrt(fan_in))."""
    params = []
    for i in range(len(DIMS) - 1):
        fan_in, fan_out = DIMS[i], DIMS[i + 1]
        key, kw, kb = jax.random.split(key, 3)
        bound = 1.0 / jnp.sqrt(fan_in)
        # Store weight already transposed: [in, out]
        w_t = jax.random.uniform(kw, (fan_in, fan_out), jnp.float32, -bound, bound)
        b = jax.random.uniform(kb, (1, fan_out), jnp.float32, -bound, bound)
        params.append((w_t, b))
    return params


def fcn_reference(x, params):
    h = x
    for i, (w, b) in enumerate(params):
        h = h @ w + b
        if i < len(params) - 1:
            h = jnp.maximum(h, 0.0)
    return h


if __name__ == "__main__":
    key = jax.random.PRNGKey(0)
    key, kx = jax.random.split(key)
    params = init_params(key)

    # Case 1: small batch, single grid step.
    B = 8
    x = jax.random.normal(kx, (B, INPUT_LEN), jnp.float32)
    ref = fcn_reference(x, params)

    out_f32 = jax.block_until_ready(fcn_forward(x, params, use_bf16=False))
    assert out_f32.shape == (B, 1), out_f32.shape
    assert jnp.allclose(out_f32, ref, atol=1e-4, rtol=1e-4), (out_f32, ref)

    out_bf16 = jax.block_until_ready(fcn_forward(x, params, use_bf16=True))
    assert out_bf16.shape == (B, 1), out_bf16.shape
    assert jnp.allclose(out_bf16, ref, atol=1e-1, rtol=1e-1), (out_bf16, ref)

    # Case 2: non-multiple batch -> batch pad + 2-step grid (exercises pipeline).
    key, kx2 = jax.random.split(key)
    B2 = 50
    x2 = jax.random.normal(kx2, (B2, INPUT_LEN), jnp.float32)
    ref2 = fcn_reference(x2, params)
    out2 = jax.block_until_ready(fcn_forward(x2, params, use_bf16=True))
    assert out2.shape == (B2, 1), out2.shape
    assert jnp.allclose(out2, ref2, atol=1e-1, rtol=1e-1), (out2, ref2)

    print("KERNEL_OK")
</pallas_src>

<mosaic_0001>
module attributes {stable_mosaic.version = 11 : i64} {
  func.func @fcn_kernel(%arg0: i32, %arg1: memref<8x40xf32, #tpu.memory_space<vmem>>, %arg2: memref<40x256xf32, #tpu.memory_space<vmem>>, %arg3: memref<1x256xf32, #tpu.memory_space<vmem>>, %arg4: memref<256x128xf32, #tpu.memory_space<vmem>>, %arg5: memref<1x128xf32, #tpu.memory_space<vmem>>, %arg6: memref<128x64xf32, #tpu.memory_space<vmem>>, %arg7: memref<1x64xf32, #tpu.memory_space<vmem>>, %arg8: memref<64x32xf32, #tpu.memory_space<vmem>>, %arg9: memref<1x32xf32, #tpu.memory_space<vmem>>, %arg10: memref<32x8xf32, #tpu.memory_space<vmem>>, %arg11: memref<1x8xf32, #tpu.memory_space<vmem>>, %arg12: memref<8x8xf32, #tpu.memory_space<vmem>>) attributes {dimension_semantics = [#tpu.dimension_semantics<parallel>], iteration_bounds = array<i64: 1>, scalar_prefetch = 0 : i64, scratch_operands = 0 : i64, tpu.core_type = #tpu.core_type<tc>, window_params = [{transform_indices = @transform_0, window_bounds = array<i64: 8, 40>}, {pipeline_mode = #tpu.pipeline_mode<synchronous>, transform_indices = @transform_1, window_bounds = array<i64: 40, 256>}, {pipeline_mode = #tpu.pipeline_mode<synchronous>, transform_indices = @transform_2, window_bounds = array<i64: 1, 256>}, {pipeline_mode = #tpu.pipeline_mode<synchronous>, transform_indices = @transform_3, window_bounds = array<i64: 256, 128>}, {pipeline_mode = #tpu.pipeline_mode<synchronous>, transform_indices = @transform_4, window_bounds = array<i64: 1, 128>}, {pipeline_mode = #tpu.pipeline_mode<synchronous>, transform_indices = @transform_5, window_bounds = array<i64: 128, 64>}, {pipeline_mode = #tpu.pipeline_mode<synchronous>, transform_indices = @transform_6, window_bounds = array<i64: 1, 64>}, {pipeline_mode = #tpu.pipeline_mode<synchronous>, transform_indices = @transform_7, window_bounds = array<i64: 64, 32>}, {pipeline_mode = #tpu.pipeline_mode<synchronous>, transform_indices = @transform_8, window_bounds = array<i64: 1, 32>}, {pipeline_mode = #tpu.pipeline_mode<synchronous>, transform_indices = @transform_9, window_bounds = array<i64: 32, 8>}, {pipeline_mode = #tpu.pipeline_mode<synchronous>, transform_indices = @transform_10, window_bounds = array<i64: 1, 8>}, {transform_indices = @transform_11, window_bounds = array<i64: 8, 8>}]} {
    %c0 = arith.constant 0 : index
    %c0_0 = arith.constant 0 : index
    %0 = vector.load %arg1[%c0, %c0_0] : memref<8x40xf32, #tpu.memory_space<vmem>>, vector<8x40xf32>
    %c0_1 = arith.constant 0 : index
    %c0_2 = arith.constant 0 : index
    %1 = vector.load %arg2[%c0_1, %c0_2] : memref<40x256xf32, #tpu.memory_space<vmem>>, vector<40x256xf32>
    %cst = arith.constant dense<0.000000e+00> : vector<8x256xf32>
    %2 = tpu.matmul %0, %1, %cst {dimension_numbers = #tpu.dot_dimension_numbers<[1], [0], [0], [1], [0, 0, 1, 1], [], []>} : vector<8x40xf32>, vector<40x256xf32>, vector<8x256xf32> -> vector<8x256xf32>
    %c0_3 = arith.constant 0 : index
    %c0_4 = arith.constant 0 : index
    %3 = vector.load %arg3[%c0_3, %c0_4] : memref<1x256xf32, #tpu.memory_space<vmem>>, vector<1x256xf32>
    %4 = vector.broadcast %3 : vector<1x256xf32> to vector<8x256xf32>
    %5 = arith.addf %2, %4 : vector<8x256xf32>
    %cst_5 = arith.constant 0.000000e+00 : f32
    %6 = vector.broadcast %cst_5 : f32 to vector<8x256xf32>
    %7 = arith.maximumf %5, %6 : vector<8x256xf32>
    %c0_6 = arith.constant 0 : index
    %c0_7 = arith.constant 0 : index
    %8 = vector.load %arg4[%c0_6, %c0_7] : memref<256x128xf32, #tpu.memory_space<vmem>>, vector<256x128xf32>
    %cst_8 = arith.constant dense<0.000000e+00> : vector<8x128xf32>
    %9 = tpu.matmul %7, %8, %cst_8 {dimension_numbers = #tpu.dot_dimension_numbers<[1], [0], [0], [1], [0, 0, 1, 1], [], []>} : vector<8x256xf32>, vector<256x128xf32>, vector<8x128xf32> -> vector<8x128xf32>
    %c0_9 = arith.constant 0 : index
    %c0_10 = arith.constant 0 : index
    %10 = vector.load %arg5[%c0_9, %c0_10] : memref<1x128xf32, #tpu.memory_space<vmem>>, vector<1x128xf32>
    %11 = vector.broadcast %10 : vector<1x128xf32> to vector<8x128xf32>
    %12 = arith.addf %9, %11 : vector<8x128xf32>
    %cst_11 = arith.constant 0.000000e+00 : f32
    %13 = vector.broadcast %cst_11 : f32 to vector<8x128xf32>
    %14 = arith.maximumf %12, %13 : vector<8x128xf32>
    %c0_12 = arith.constant 0 : index
    %c0_13 = arith.constant 0 : index
    %15 = vector.load %arg6[%c0_12, %c0_13] : memref<128x64xf32, #tpu.memory_space<vmem>>, vector<128x64xf32>
    %cst_14 = arith.constant dense<0.000000e+00> : vector<8x64xf32>
    %16 = tpu.matmul %14, %15, %cst_14 {dimension_numbers = #tpu.dot_dimension_numbers<[1], [0], [0], [1], [0, 0, 1, 1], [], []>} : vector<8x128xf32>, vector<128x64xf32>, vector<8x64xf32> -> vector<8x64xf32>
    %c0_15 = arith.constant 0 : index
    %c0_16 = arith.constant 0 : index
    %17 = vector.load %arg7[%c0_15, %c0_16] : memref<1x64xf32, #tpu.memory_space<vmem>>, vector<1x64xf32>
    %18 = vector.broadcast %17 : vector<1x64xf32> to vector<8x64xf32>
    %19 = arith.addf %16, %18 : vector<8x64xf32>
    %cst_17 = arith.constant 0.000000e+00 : f32
    %20 = vector.broadcast %cst_17 : f32 to vector<8x64xf32>
    %21 = arith.maximumf %19, %20 : vector<8x64xf32>
    %c0_18 = arith.constant 0 : index
    %c0_19 = arith.constant 0 : index
    %22 = vector.load %arg8[%c0_18, %c0_19] : memref<64x32xf32, #tpu.memory_space<vmem>>, vector<64x32xf32>
    %cst_20 = arith.constant dense<0.000000e+00> : vector<8x32xf32>
    %23 = tpu.matmul %21, %22, %cst_20 {dimension_numbers = #tpu.dot_dimension_numbers<[1], [0], [0], [1], [0, 0, 1, 1], [], []>} : vector<8x64xf32>, vector<64x32xf32>, vector<8x32xf32> -> vector<8x32xf32>
    %c0_21 = arith.constant 0 : index
    %c0_22 = arith.constant 0 : index
    %24 = vector.load %arg9[%c0_21, %c0_22] : memref<1x32xf32, #tpu.memory_space<vmem>>, vector<1x32xf32>
    %25 = vector.broadcast %24 : vector<1x32xf32> to vector<8x32xf32>
    %26 = arith.addf %23, %25 : vector<8x32xf32>
    %cst_23 = arith.constant 0.000000e+00 : f32
    %27 = vector.broadcast %cst_23 : f32 to vector<8x32xf32>
    %28 = arith.maximumf %26, %27 : vector<8x32xf32>
    %c0_24 = arith.constant 0 : index
    %c0_25 = arith.constant 0 : index
    %29 = vector.load %arg10[%c0_24, %c0_25] : memref<32x8xf32, #tpu.memory_space<vmem>>, vector<32x8xf32>
    %cst_26 = arith.constant dense<0.000000e+00> : vector<8x8xf32>
    %30 = tpu.matmul %28, %29, %cst_26 {dimension_numbers = #tpu.dot_dimension_numbers<[1], [0], [0], [1], [0, 0, 1, 1], [], []>} : vector<8x32xf32>, vector<32x8xf32>, vector<8x8xf32> -> vector<8x8xf32>
    %c0_27 = arith.constant 0 : index
    %c0_28 = arith.constant 0 : index
    %31 = vector.load %arg11[%c0_27, %c0_28] : memref<1x8xf32, #tpu.memory_space<vmem>>, vector<1x8xf32>
    %32 = vector.broadcast %31 : vector<1x8xf32> to vector<8x8xf32>
    %33 = arith.addf %30, %32 : vector<8x8xf32>
    %c0_29 = arith.constant 0 : index
    %c0_30 = arith.constant 0 : index
    %34 = vector.load %arg12[%c0_29, %c0_30] : memref<8x8xf32, #tpu.memory_space<vmem>>, vector<8x8xf32>
    tpu.vector_store %arg12[%c0_29, %c0_30], %33 {strides = array<i32>} : memref<8x8xf32, #tpu.memory_space<vmem>>, vector<8x8xf32>,
    return
  }
  func.func @transform_0(%arg0: i32) -> (i32, i32) {
    %c0_i32 = arith.constant 0 : i32
    %c0_i32_0 = arith.constant 0 : i32
    return %arg0, %c0_i32 : i32, i32
  }
  func.func @transform_1(%arg0: i32) -> (i32, i32) {
    %c0_i32 = arith.constant 0 : i32
    %c0_i32_0 = arith.constant 0 : i32
    %c0_i32_1 = arith.constant 0 : i32
    return %c0_i32, %c0_i32_0 : i32, i32
  }
  func.func @transform_2(%arg0: i32) -> (i32, i32) {
    %c0_i32 = arith.constant 0 : i32
    %c0_i32_0 = arith.constant 0 : i32
    %c0_i32_1 = arith.constant 0 : i32
    return %c0_i32, %c0_i32_0 : i32, i32
  }
  func.func @transform_3(%arg0: i32) -> (i32, i32) {
    %c0_i32 = arith.constant 0 : i32
    %c0_i32_0 = arith.constant 0 : i32
    %c0_i32_1 = arith.constant 0 : i32
    return %c0_i32, %c0_i32_0 : i32, i32
  }
  func.func @transform_4(%arg0: i32) -> (i32, i32) {
    %c0_i32 = arith.constant 0 : i32
    %c0_i32_0 = arith.constant 0 : i32
    %c0_i32_1 = arith.constant 0 : i32
    return %c0_i32, %c0_i32_0 : i32, i32
  }
  func.func @transform_5(%arg0: i32) -> (i32, i32) {
    %c0_i32 = arith.constant 0 : i32
    %c0_i32_0 = arith.constant 0 : i32
    %c0_i32_1 = arith.constant 0 : i32
    return %c0_i32, %c0_i32_0 : i32, i32
  }
  func.func @transform_6(%arg0: i32) -> (i32, i32) {
    %c0_i32 = arith.constant 0 : i32
    %c0_i32_0 = arith.constant 0 : i32
    %c0_i32_1 = arith.constant 0 : i32
    return %c0_i32, %c0_i32_0 : i32, i32
  }
  func.func @transform_7(%arg0: i32) -> (i32, i32) {
    %c0_i32 = arith.constant 0 : i32
    %c0_i32_0 = arith.constant 0 : i32
    %c0_i32_1 = arith.constant 0 : i32
    return %c0_i32, %c0_i32_0 : i32, i32
  }
  func.func @transform_8(%arg0: i32) -> (i32, i32) {
    %c0_i32 = arith.constant 0 : i32
    %c0_i32_0 = arith.constant 0 : i32
    %c0_i32_1 = arith.constant 0 : i32
    return %c0_i32, %c0_i32_0 : i32, i32
  }
  func.func @transform_9(%arg0: i32) -> (i32, i32) {
    %c0_i32 = arith.constant 0 : i32
    %c0_i32_0 = arith.constant 0 : i32
    %c0_i32_1 = arith.constant 0 : i32
    return %c0_i32, %c0_i32_0 : i32, i32
  }
  func.func @transform_10(%arg0: i32) -> (i32, i32) {
    %c0_i32 = arith.constant 0 : i32
    %c0_i32_0 = arith.constant 0 : i32
    %c0_i32_1 = arith.constant 0 : i32
    return %c0_i32, %c0_i32_0 : i32, i32
  }
  func.func @transform_11(%arg0: i32) -> (i32, i32) {
    %c0_i32 = arith.constant 0 : i32
    %c0_i32_0 = arith.constant 0 : i32
    return %arg0, %c0_i32 : i32, i32
  }
}

</mosaic_0001>

<llo_original>
// kernel: tpu_custom_call.1
$region0: #{tpu_custom_call.1}
  #allocation0 [shape = 'u32[]', space=smem, size = 0x4, offset = 0x4, fixed_abs, tag = 'smem constant byte address 0x4 - core index']
  #allocation1 [shape = 'u32[144,128]{1,0:T(1,128)}', space=vmem, size = 0x12000, scoped, tag = 'internal scratch']
  %s0 = inlined_call_operand.vmem [shape: f32[8,40], index: 0, kind: input, shape index: {}]
  %s1 = inlined_call_operand.hbm [shape: f32[40,256], index: 1, kind: input, shape index: {}]
  %s2 = inlined_call_operand.vmem [shape: f32[1,256], index: 2, kind: input, shape index: {}]
  %s3 = inlined_call_operand.vmem [shape: f32[256,128], index: 3, kind: input, shape index: {}]
  %s4 = inlined_call_operand.vmem [shape: f32[1,128], index: 4, kind: input, shape index: {}]
  %s5 = inlined_call_operand.vmem [shape: f32[128,64], index: 5, kind: input, shape index: {}]
  %s6 = inlined_call_operand.vmem [shape: f32[1,64], index: 6, kind: input, shape index: {}]
  %s7 = inlined_call_operand.vmem [shape: f32[64,32], index: 7, kind: input, shape index: {}]
  %s8 = inlined_call_operand.vmem [shape: f32[1,32], index: 8, kind: input, shape index: {}]
  %s9 = inlined_call_operand.vmem [shape: f32[32,8], index: 9, kind: input, shape index: {}]
  %s10 = inlined_call_operand.vmem [shape: f32[1,8], index: 10, kind: input, shape index: {}]
  %s11 = inlined_call_operand.hbm [shape: f32[8,8], index: 11, kind: output, shape index: {}]
  %s12 = sld [smem:[#allocation0]]
  $region58: #{tpu_custom_call.1} parent=0
    _
  %s14 = ssub.s32 1, %s12
  %s15 = scalar_select 0, %s14, %s12
  $region1: #{tpu_custom_call.1} parent=0
    #allocation2 [shape = 'u8[40960]{0}', space=vmem, size = 0xa000, scoped, tag = 'input window, operand 1, single buffered']
    #allocation3 [shape = 's32[1]{0}', space=sflag, size = 0x4, scoped, tag = 'scoped memory for tpu_custom_call.1']
    #allocation4 [shape = 's32[1]{0}', space=sflag, size = 0x4, scoped, tag = 'scoped memory for tpu_custom_call.1']
    #allocation5 [shape = 'u8[4096]{0}', space=vmem, size = 0x1000, scoped, tag = 'output window, operand 0, single buffered']
    %16 = vsyncpa [#allocation3], 0
    %17 = vsyncpa [#allocation4], 0
    // Predicated region
    $region2: #{tpu_custom_call.1} parent=1 // pred_check
      _
    $region3: #{tpu_custom_call.1} parent=1 // pred_check_branch
      %19 = sbr.rel (0) target = $region5
    $region4: #{tpu_custom_call.1} parent=1 // pred_region
      _
    $region5: #{tpu_custom_call.1} parent=1 // pred_fallthru
      _
    // Predicated region
    $region6: #{tpu_custom_call.1} parent=1 // pred_check
      _
    $region7: #{tpu_custom_call.1} parent=1 // pred_check_branch
      %21 = sbr.rel (0) target = $region9
    $region8: #{tpu_custom_call.1} parent=1 // pred_region
      %s23 = ssub.s32 1280, 1280
      %24 = vsyncadd [#allocation3], %s23
      %s25 = sshll.u32 [#allocation2], 4
      %s26 = int_to_ptr.vmem [resolvable:$true] %s25
      %31 = dma.hbm_to_vmem [thread:$0]  %s1, 1280, %s26, [#allocation3], 256, 256, 16
    $region9: #{tpu_custom_call.1} parent=1 // pred_fallthru
      _
    // Predicated region
    $region10: #{tpu_custom_call.1} parent=1 // pred_check
      _
    $region11: #{tpu_custom_call.1} parent=1 // pred_check_branch
      %33 = sbr.rel (0) target = $region13
    $region12: #{tpu_custom_call.1} parent=1 // pred_region
      _
    $region13: #{tpu_custom_call.1} parent=1 // pred_fallthru
      _
    // Predicated region
    $region14: #{tpu_custom_call.1} parent=1 // pred_check
      _
    $region15: #{tpu_custom_call.1} parent=1 // pred_check_branch
      %35 = sbr.rel (0) target = $region17
    $region16: #{tpu_custom_call.1} parent=1 // pred_region
      _
    $region17: #{tpu_custom_call.1} parent=1 // pred_fallthru
      _
    // Predicated region
    $region18: #{tpu_custom_call.1} parent=1 // pred_check
      _
    $region19: #{tpu_custom_call.1} parent=1 // pred_check_branch
      %37 = sbr.rel (0) target = $region21
    $region20: #{tpu_custom_call.1} parent=1 // pred_region
      _
    $region21: #{tpu_custom_call.1} parent=1 // pred_fallthru
      _
    // Predicated region
    $region22: #{tpu_custom_call.1} parent=1 // pred_check
      _
    $region23: #{tpu_custom_call.1} parent=1 // pred_check_branch
      %39 = sbr.rel (0) target = $region25
    $region24: #{tpu_custom_call.1} parent=1 // pred_region
      _
    $region25: #{tpu_custom_call.1} parent=1 // pred_fallthru
      _
    // Predicated region
    $region26: #{tpu_custom_call.1} parent=1 // pred_check
      _
    $region27: #{tpu_custom_call.1} parent=1 // pred_check_branch
      %41 = sbr.rel (0) target = $region29
    $region28: #{tpu_custom_call.1} parent=1 // pred_region
      _
    $region29: #{tpu_custom_call.1} parent=1 // pred_fallthru
      _
    // Predicated region
    $region30: #{tpu_custom_call.1} parent=1 // pred_check
      _
    $region31: #{tpu_custom_call.1} parent=1 // pred_check_branch
      %43 = sbr.rel (0) target = $region33
    $region32: #{tpu_custom_call.1} parent=1 // pred_region
      _
    $region33: #{tpu_custom_call.1} parent=1 // pred_fallthru
      _
    // Predicated region
    $region34: #{tpu_custom_call.1} parent=1 // pred_check
      _
    $region35: #{tpu_custom_call.1} parent=1 // pred_check_branch
      %45 = sbr.rel (0) target = $region37
    $region36: #{tpu_custom_call.1} parent=1 // pred_region
      _
    $region37: #{tpu_custom_call.1} parent=1 // pred_fallthru
      _
    // Predicated region
    $region38: #{tpu_custom_call.1} parent=1 // pred_check
      _
    $region39: #{tpu_custom_call.1} parent=1 // pred_check_branch
      %47 = sbr.rel (0) target = $region41
    $region40: #{tpu_custom_call.1} parent=1 // pred_region
      _
    $region41: #{tpu_custom_call.1} parent=1 // pred_fallthru
      _
    // Predicated region
    $region42: #{tpu_custom_call.1} parent=1 // pred_check
      _
    $region43: #{tpu_custom_call.1} parent=1 // pred_check_branch
      %49 = sbr.rel (0) target = $region45
    $region44: #{tpu_custom_call.1} parent=1 // pred_region
      _
    $region45: #{tpu_custom_call.1} parent=1 // pred_fallthru
      _
    // Predicated region
    $region46: #{tpu_custom_call.1} parent=1 // pred_check
      _
    $region47: #{tpu_custom_call.1} parent=1 // pred_check_branch
      %51 = sbr.rel (0) target = $region49
    $region48: #{tpu_custom_call.1} parent=1 // pred_region
      %52 = dma.done [#allocation3], 1280
    $region49: #{tpu_custom_call.1} parent=1 // pred_fallthru
      _
    %v53 = vld [vmem:[%s0] sm:$0xff]
    %v54 = vld [vmem:[#allocation2] sm:$0xff]
    %v55 = vld [vmem:[#allocation2 + $0x8] sm:$0xff]
    %v56 = vld [vmem:[#allocation2 + $0x10] sm:$0xff]
    %v57 = vld [vmem:[#allocation2 + $0x18] sm:$0xff]
    %v58 = vld [vmem:[#allocation2 + $0x20] sm:$0xff]
    %v59 = vld [vmem:[#allocation2 + $0x28] sm:$0xff]
    %v60 = vld [vmem:[#allocation2 + $0x30] sm:$0xff]
    %v61 = vld [vmem:[#allocation2 + $0x38] sm:$0xff]
    %v62 = vld [vmem:[#allocation2 + $0x40] sm:$0xff]
    %v63 = vld [vmem:[#allocation2 + $0x48] sm:$0xff]
    %v64 = vld [vmem:[%s2] sm:$0x3]
    %v66 = vlaneseq
    %v67 = vshrl.u32 %v66, 7
    %v68 = vsub.s32 0, %v67
    %v69 = vrot.slane %v64, %v68
    %v70 = vlaneseq
    %v71 = vshrl.u32 %v70, 7
    %v72 = vsub.s32 1, %v71
    %v73 = vrot.slane %v64, %v72
    %vm76 = vcmask 326656
    %v78 = vsel %vm76, %v53, 0
    %80 = vmatprep.subr.mxu0 0.0
    %81 = vmatpush1.msra.mxu0 0.0
    %82 = vmatprep.subr.mxu0 0.0
    %83 = vmatpush1.msra.mxu0 0.0
    %84 = vmatprep.subr.mxu0 0.0
    %85 = vmatpush1.msra.mxu0 0.0
    %86 = vmatprep.subr.mxu0 0.0
    %87 = vmatpush1.msra.mxu0 0.0
    %88 = vmatprep.subr.mxu0 0.0
    %89 = vmatpush1.msra.mxu0 0.0
    %90 = vmatprep.subr.mxu0 0.0
    %91 = vmatpush1.msra.mxu0 0.0
    %92 = vmatprep.subr.mxu0 0.0
    %93 = vmatpush1.msra.mxu0 0.0
    %94 = vmatprep.subr.mxu0 0.0
    %95 = vmatpush1.msra.mxu0 0.0
    %96 = vmatprep.subr.mxu0 0.0
    %97 = vmatpush1.msra.mxu0 0.0
    %98 = vmatprep.subr.mxu0 0.0
    %99 = vmatpush1.msra.mxu0 0.0
    %100 = vmatprep.subr.mxu0 0.0
    %101 = vmatpush1.msra.mxu0 0.0
    %102 = vmatprep.subr.mxu0 %v63
    %103 = vmatpush1.msra.mxu0 %v62
    %104 = vmatprep.subr.mxu0 %v61
    %105 = vmatpush1.msra.mxu0 %v60
    %106 = vmatprep.subr.mxu0 %v59
    %107 = vmatpush1.msra.mxu0 %v58
    %108 = vmatprep.subr.mxu0 %v57
    %109 = vmatpush1.msra.mxu0 %v56
    %110 = vmatprep.subr.mxu0 %v55
    %111 = vmatpush1.msra.mxu0 %v54
    %112 = vmatprep.subr.mxu0 0.0
    %113 = vmatpush2.msra.mxu0 0.0
    %114 = vmatprep.subr.mxu0 0.0
    %115 = vmatpush2.msra.mxu0 0.0
    %116 = vmatprep.subr.mxu0 0.0
    %117 = vmatpush2.msra.mxu0 0.0
    %118 = vmatprep.subr.mxu0 0.0
    %119 = vmatpush2.msra.mxu0 0.0
    %120 = vmatprep.subr.mxu0 0.0
    %121 = vmatpush2.msra.mxu0 0.0
    %122 = vmatprep.subr.mxu0 0.0
    %123 = vmatpush2.msra.mxu0 0.0
    %124 = vmatprep.subr.mxu0 0.0
    %125 = vmatpush2.msra.mxu0 0.0
    %126 = vmatprep.subr.mxu0 0.0
    %127 = vmatpush2.msra.mxu0 0.0
    %128 = vmatprep.subr.mxu0 0.0
    %129 = vmatpush2.msra.mxu0 0.0
    %130 = vmatprep.subr.mxu0 0.0
    %131 = vmatpush2.msra.mxu0 0.0
    %132 = vmatprep.subr.mxu0 0.0
    %133 = vmatpush2.msra.mxu0 0.0
    %134 = vmatprep.subr.mxu0 0.0
    %135 = vmatpush2.msra.mxu0 0.0
    %136 = vmatprep.subr.mxu0 0.0
    %137 = vmatpush2.msra.mxu0 0.0
    %138 = vmatprep.subr.mxu0 0.0
    %139 = vmatpush2.msra.mxu0 0.0
    %140 = vmatprep.subr.mxu0 0.0
    %141 = vmatpush2.msra.mxu0 0.0
    %142 = vmatprep.subr.mxu0 0.0
    %143 = vmatpush2.msra.mxu0 0.0
    %144 = vmatprep.mubr.f32.mxu0 0.0
    %145 = vmatmul.mubr.f32.gmra.mxu0 %v78
    %v146 = vpop.f32.mrf.mxu0
    %v147 = vadd.f32 %v69, %v146
    %v148 = vpop.f32.mrf.mxu0
    %v149 = vadd.f32 %v73, %v148
    %150 = vdwg.mxu0
    %v151 = vmax.f32 %v147, 0.0
    %v152 = vmax.f32 %v149, 0.0
    %v153 = vld [vmem:[%s3] sm:$0xff]
    %v154 = vld [vmem:[%s3 + $0x8] sm:$0xff]
    %v155 = vld [vmem:[%s3 + $0x10] sm:$0xff]
    %v156 = vld [vmem:[%s3 + $0x18] sm:$0xff]
    %v157 = vld [vmem:[%s3 + $0x20] sm:$0xff]
    %v158 = vld [vmem:[%s3 + $0x28] sm:$0xff]
    %v159 = vld [vmem:[%s3 + $0x30] sm:$0xff]
    %v160 = vld [vmem:[%s3 + $0x38] sm:$0xff]
    %v161 = vld [vmem:[%s3 + $0x40] sm:$0xff]
    %v162 = vld [vmem:[%s3 + $0x48] sm:$0xff]
    %v163 = vld [vmem:[%s3 + $0x50] sm:$0xff]
    %v164 = vld [vmem:[%s3 + $0x58] sm:$0xff]
    %v165 = vld [vmem:[%s3 + $0x60] sm:$0xff]
    %v166 = vld [vmem:[%s3 + $0x68] sm:$0xff]
    %v167 = vld [vmem:[%s3 + $0x70] sm:$0xff]
    %v168 = vld [vmem:[%s3 + $0x78] sm:$0xff]
    %v169 = vld [vmem:[%s3 + $0x80] sm:$0xff]
    %v170 = vld [vmem:[%s3 + $0x88] sm:$0xff]
    %v171 = vld [vmem:[%s3 + $0x90] sm:$0xff]
    %v172 = vld [vmem:[%s3 + $0x98] sm:$0xff]
    %v173 = vld [vmem:[%s3 + $0xa0] sm:$0xff]
    %v174 = vld [vmem:[%s3 + $0xa8] sm:$0xff]
    %v175 = vld [vmem:[%s3 + $0xb0] sm:$0xff]
    %v176 = vld [vmem:[%s3 + $0xb8] sm:$0xff]
    %v177 = vld [vmem:[%s3 + $0xc0] sm:$0xff]
    %v178 = vld [vmem:[%s3 + $0xc8] sm:$0xff]
    %v179 = vld [vmem:[%s3 + $0xd0] sm:$0xff]
    %v180 = vld [vmem:[%s3 + $0xd8] sm:$0xff]
    %v181 = vld [vmem:[%s3 + $0xe0] sm:$0xff]
    %v182 = vld [vmem:[%s3 + $0xe8] sm:$0xff]
    %v183 = vld [vmem:[%s3 + $0xf0] sm:$0xff]
    %v184 = vld [vmem:[%s3 + $0xf8] sm:$0xff]
    %v185 = vld [vmem:[%s4] sm:$0x1]
    %v187 = vlaneseq
    %v188 = vshrl.u32 %v187, 7
    %v189 = vsub.s32 0, %v188
    %v190 = vrot.slane %v185, %v189
    %192 = vmatprep.subr.mxu0 0.0
    %193 = vmatpush1.msra.mxu0 %v168
    %194 = vmatprep.subr.mxu0 0.0
    %195 = vmatpush1.msra.mxu0 %v167
    %196 = vmatprep.subr.mxu0 0.0
    %197 = vmatpush1.msra.mxu0 %v166
    %198 = vmatprep.subr.mxu0 0.0
    %199 = vmatpush1.msra.mxu0 %v165
    %200 = vmatprep.subr.mxu0 0.0
    %201 = vmatpush1.msra.mxu0 %v164
    %202 = vmatprep.subr.mxu0 0.0
    %203 = vmatpush1.msra.mxu0 %v163
    %204 = vmatprep.subr.mxu0 0.0
    %205 = vmatpush1.msra.mxu0 %v162
    %206 = vmatprep.subr.mxu0 0.0
    %207 = vmatpush1.msra.mxu0 %v161
    %208 = vmatprep.subr.mxu0 0.0
    %209 = vmatpush1.msra.mxu0 %v160
    %210 = vmatprep.subr.mxu0 0.0
    %211 = vmatpush1.msra.mxu0 %v159
    %212 = vmatprep.subr.mxu0 0.0
    %213 = vmatpush1.msra.mxu0 %v158
    %214 = vmatprep.subr.mxu0 0.0
    %215 = vmatpush1.msra.mxu0 %v157
    %216 = vmatprep.subr.mxu0 0.0
    %217 = vmatpush1.msra.mxu0 %v156
    %218 = vmatprep.subr.mxu0 0.0
    %219 = vmatpush1.msra.mxu0 %v155
    %220 = vmatprep.subr.mxu0 0.0
    %221 = vmatpush1.msra.mxu0 %v154
    %222 = vmatprep.subr.mxu0 0.0
    %223 = vmatpush1.msra.mxu0 %v153
    %224 = vmatprep.subr.mxu0 0.0
    %225 = vmatpush2.msra.mxu0 %v184
    %226 = vmatprep.subr.mxu0 0.0
    %227 = vmatpush2.msra.mxu0 %v183
    %228 = vmatprep.subr.mxu0 0.0
    %229 = vmatpush2.msra.mxu0 %v182
    %230 = vmatprep.subr.mxu0 0.0
    %231 = vmatpush2.msra.mxu0 %v181
    %232 = vmatprep.subr.mxu0 0.0
    %233 = vmatpush2.msra.mxu0 %v180
    %234 = vmatprep.subr.mxu0 0.0
    %235 = vmatpush2.msra.mxu0 %v179
    %236 = vmatprep.subr.mxu0 0.0
    %237 = vmatpush2.msra.mxu0 %v178
    %238 = vmatprep.subr.mxu0 0.0
    %239 = vmatpush2.msra.mxu0 %v177
    %240 = vmatprep.subr.mxu0 0.0
    %241 = vmatpush2.msra.mxu0 %v176
    %242 = vmatprep.subr.mxu0 0.0
    %243 = vmatpush2.msra.mxu0 %v175
    %244 = vmatprep.subr.mxu0 0.0
    %245 = vmatpush2.msra.mxu0 %v174
    %246 = vmatprep.subr.mxu0 0.0
    %247 = vmatpush2.msra.mxu0 %v173
    %248 = vmatprep.subr.mxu0 0.0
    %249 = vmatpush2.msra.mxu0 %v172
    %250 = vmatprep.subr.mxu0 0.0
    %251 = vmatpush2.msra.mxu0 %v171
    %252 = vmatprep.subr.mxu0 0.0
    %253 = vmatpush2.msra.mxu0 %v170
    %254 = vmatprep.subr.mxu0 0.0
    %255 = vmatpush2.msra.mxu0 %v169
    %256 = vmatprep.mubr.f32.mxu0 %v152
    %257 = vmatmul.mubr.f32.gmra.mxu0 %v151
    %v258 = vpop.f32.mrf.mxu0
    %v259 = vadd.f32 %v190, %v258
    %v260 = vpop.f32.mrf.mxu0
    %261 = vdwg.mxu0
    %v262 = vmax.f32 %v259, 0.0
    %v263 = vld [vmem:[%s5] sm:$0xff]
    %v264 = vld [vmem:[%s5 + $0x8] sm:$0xff]
    %v265 = vld [vmem:[%s5 + $0x10] sm:$0xff]
    %v266 = vld [vmem:[%s5 + $0x18] sm:$0xff]
    %v267 = vld [vmem:[%s5 + $0x20] sm:$0xff]
    %v268 = vld [vmem:[%s5 + $0x28] sm:$0xff]
    %v269 = vld [vmem:[%s5 + $0x30] sm:$0xff]
    %v270 = vld [vmem:[%s5 + $0x38] sm:$0xff]
    %v271 = vld [vmem:[%s5 + $0x40] sm:$0xff]
    %v272 = vld [vmem:[%s5 + $0x48] sm:$0xff]
    %v273 = vld [vmem:[%s5 + $0x50] sm:$0xff]
    %v274 = vld [vmem:[%s5 + $0x58] sm:$0xff]
    %v275 = vld [vmem:[%s5 + $0x60] sm:$0xff]
    %v276 = vld [vmem:[%s5 + $0x68] sm:$0xff]
    %v277 = vld [vmem:[%s5 + $0x70] sm:$0xff]
    %v278 = vld [vmem:[%s5 + $0x78] sm:$0xff]
    %v279 = vld [vmem:[%s6] sm:$0x1]
    %v281 = vlaneseq
    %v282 = vshrl.u32 %v281, 7
    %v283 = vsub.s32 0, %v282
    %v284 = vrot.slane %v279, %v283
    %286 = vmatprep.subr.mxu0 0.0
    %287 = vmatpush1.msra.mxu0 %v278
    %288 = vmatprep.subr.mxu0 0.0
    %289 = vmatpush1.msra.mxu0 %v277
    %290 = vmatprep.subr.mxu0 0.0
    %291 = vmatpush1.msra.mxu0 %v276
    %292 = vmatprep.subr.mxu0 0.0
    %293 = vmatpush1.msra.mxu0 %v275
    %294 = vmatprep.subr.mxu0 0.0
    %295 = vmatpush1.msra.mxu0 %v274
    %296 = vmatprep.subr.mxu0 0.0
    %297 = vmatpush1.msra.mxu0 %v273
    %298 = vmatprep.subr.mxu0 0.0
    %299 = vmatpush1.msra.mxu0 %v272
    %300 = vmatprep.subr.mxu0 0.0
    %301 = vmatpush1.msra.mxu0 %v271
    %302 = vmatprep.subr.mxu0 0.0
    %303 = vmatpush1.msra.mxu0 %v270
    %304 = vmatprep.subr.mxu0 0.0
    %305 = vmatpush1.msra.mxu0 %v269
    %306 = vmatprep.subr.mxu0 0.0
    %307 = vmatpush1.msra.mxu0 %v268
    %308 = vmatprep.subr.mxu0 0.0
    %309 = vmatpush1.msra.mxu0 %v267
    %310 = vmatprep.subr.mxu0 0.0
    %311 = vmatpush1.msra.mxu0 %v266
    %312 = vmatprep.subr.mxu0 0.0
    %313 = vmatpush1.msra.mxu0 %v265
    %314 = vmatprep.subr.mxu0 0.0
    %315 = vmatpush1.msra.mxu0 %v264
    %316 = vmatprep.subr.mxu0 0.0
    %317 = vmatpush1.msra.mxu0 %v263
    %318 = vmatprep.subr.mxu0 0.0
    %319 = vmatpush2.msra.mxu0 0.0
    %320 = vmatprep.subr.mxu0 0.0
    %321 = vmatpush2.msra.mxu0 0.0
    %322 = vmatprep.subr.mxu0 0.0
    %323 = vmatpush2.msra.mxu0 0.0
    %324 = vmatprep.subr.mxu0 0.0
    %325 = vmatpush2.msra.mxu0 0.0
    %326 = vmatprep.subr.mxu0 0.0
    %327 = vmatpush2.msra.mxu0 0.0
    %328 = vmatprep.subr.mxu0 0.0
    %329 = vmatpush2.msra.mxu0 0.0
    %330 = vmatprep.subr.mxu0 0.0
    %331 = vmatpush2.msra.mxu0 0.0
    %332 = vmatprep.subr.mxu0 0.0
    %333 = vmatpush2.msra.mxu0 0.0
    %334 = vmatprep.subr.mxu0 0.0
    %335 = vmatpush2.msra.mxu0 0.0
    %336 = vmatprep.subr.mxu0 0.0
    %337 = vmatpush2.msra.mxu0 0.0
    %338 = vmatprep.subr.mxu0 0.0
    %339 = vmatpush2.msra.mxu0 0.0
    %340 = vmatprep.subr.mxu0 0.0
    %341 = vmatpush2.msra.mxu0 0.0
    %342 = vmatprep.subr.mxu0 0.0
    %343 = vmatpush2.msra.mxu0 0.0
    %344 = vmatprep.subr.mxu0 0.0
    %345 = vmatpush2.msra.mxu0 0.0
    %346 = vmatprep.subr.mxu0 0.0
    %347 = vmatpush2.msra.mxu0 0.0
    %348 = vmatprep.subr.mxu0 0.0
    %349 = vmatpush2.msra.mxu0 0.0
    %350 = vmatprep.mubr.f32.mxu0 0.0
    %351 = vmatmul.mubr.f32.gmra.mxu0 %v262
    %v352 = vpop.f32.mrf.mxu0
    %v353 = vadd.f32 %v284, %v352
    %v354 = vpop.f32.mrf.mxu0
    %355 = vdwg.mxu0
    %v356 = vmax.f32 %v353, 0.0
    %v357 = vld [vmem:[%s7] sm:$0xff]
    %v358 = vld [vmem:[%s7 + $0x8] sm:$0xff]
    %v359 = vld [vmem:[%s7 + $0x10] sm:$0xff]
    %v360 = vld [vmem:[%s7 + $0x18] sm:$0xff]
    %v361 = vld [vmem:[%s7 + $0x20] sm:$0xff]
    %v362 = vld [vmem:[%s7 + $0x28] sm:$0xff]
    %v363 = vld [vmem:[%s7 + $0x30] sm:$0xff]
    %v364 = vld [vmem:[%s7 + $0x38] sm:$0xff]
    %v365 = vld [vmem:[%s8] sm:$0x1]
    %v367 = vlaneseq
    %v368 = vshrl.u32 %v367, 7
    %v369 = vsub.s32 0, %v368
    %v370 = vrot.slane %v365, %v369
    %vm372 = vcmask 523264
    %v374 = vsel %vm372, %v356, 0
    %376 = vmatprep.subr.mxu0 0.0
    %377 = vmatpush1.msra.mxu0 0.0
    %378 = vmatprep.subr.mxu0 0.0
    %379 = vmatpush1.msra.mxu0 0.0
    %380 = vmatprep.subr.mxu0 0.0
    %381 = vmatpush1.msra.mxu0 0.0
    %382 = vmatprep.subr.mxu0 0.0
    %383 = vmatpush1.msra.mxu0 0.0
    %384 = vmatprep.subr.mxu0 0.0
    %385 = vmatpush1.msra.mxu0 0.0
    %386 = vmatprep.subr.mxu0 0.0
    %387 = vmatpush1.msra.mxu0 0.0
    %388 = vmatprep.subr.mxu0 0.0
    %389 = vmatpush1.msra.mxu0 0.0
    %390 = vmatprep.subr.mxu0 0.0
    %391 = vmatpush1.msra.mxu0 0.0
    %392 = vmatprep.subr.mxu0 0.0
    %393 = vmatpush1.msra.mxu0 %v364
    %394 = vmatprep.subr.mxu0 0.0
    %395 = vmatpush1.msra.mxu0 %v363
    %396 = vmatprep.subr.mxu0 0.0
    %397 = vmatpush1.msra.mxu0 %v362
    %398 = vmatprep.subr.mxu0 0.0
    %399 = vmatpush1.msra.mxu0 %v361
    %400 = vmatprep.subr.mxu0 0.0
    %401 = vmatpush1.msra.mxu0 %v360
    %402 = vmatprep.subr.mxu0 0.0
    %403 = vmatpush1.msra.mxu0 %v359
    %404 = vmatprep.subr.mxu0 0.0
    %405 = vmatpush1.msra.mxu0 %v358
    %406 = vmatprep.subr.mxu0 0.0
    %407 = vmatpush1.msra.mxu0 %v357
    %408 = vmatprep.subr.mxu0 0.0
    %409 = vmatpush2.msra.mxu0 0.0
    %410 = vmatprep.subr.mxu0 0.0
    %411 = vmatpush2.msra.mxu0 0.0
    %412 = vmatprep.subr.mxu0 0.0
    %413 = vmatpush2.msra.mxu0 0.0
    %414 = vmatprep.subr.mxu0 0.0
    %415 = vmatpush2.msra.mxu0 0.0
    %416 = vmatprep.subr.mxu0 0.0
    %417 = vmatpush2.msra.mxu0 0.0
    %418 = vmatprep.subr.mxu0 0.0
    %419 = vmatpush2.msra.mxu0 0.0
    %420 = vmatprep.subr.mxu0 0.0
    %421 = vmatpush2.msra.mxu0 0.0
    %422 = vmatprep.subr.mxu0 0.0
    %423 = vmatpush2.msra.mxu0 0.0
    %424 = vmatprep.subr.mxu0 0.0
    %425 = vmatpush2.msra.mxu0 0.0
    %426 = vmatprep.subr.mxu0 0.0
    %427 = vmatpush2.msra.mxu0 0.0
    %428 = vmatprep.subr.mxu0 0.0
    %429 = vmatpush2.msra.mxu0 0.0
    %430 = vmatprep.subr.mxu0 0.0
    %431 = vmatpush2.msra.mxu0 0.0
    %432 = vmatprep.subr.mxu0 0.0
    %433 = vmatpush2.msra.mxu0 0.0
    %434 = vmatprep.subr.mxu0 0.0
    %435 = vmatpush2.msra.mxu0 0.0
    %436 = vmatprep.subr.mxu0 0.0
    %437 = vmatpush2.msra.mxu0 0.0
    %438 = vmatprep.subr.mxu0 0.0
    %439 = vmatpush2.msra.mxu0 0.0
    %440 = vmatprep.mubr.f32.mxu0 0.0
    %441 = vmatmul.mubr.f32.gmra.mxu0 %v374
    %v442 = vpop.f32.mrf.mxu0
    %v443 = vadd.f32 %v370, %v442
    %v444 = vpop.f32.mrf.mxu0
    %445 = vdwg.mxu0
    %v446 = vmax.f32 %v443, 0.0
    %v447 = vld [vmem:[%s9] sm:$0xff]
    %v448 = vld [vmem:[%s9 + $0x8] sm:$0xff]
    %v449 = vld [vmem:[%s9 + $0x10] sm:$0xff]
    %v450 = vld [vmem:[%s9 + $0x18] sm:$0xff]
    %v451 = vld [vmem:[%s10] sm:$0x1]
    %v453 = vlaneseq
    %v454 = vshrl.u32 %v453, 7
    %v455 = vsub.s32 0, %v454
    %v456 = vrot.slane %v451, %v455
    %vm458 = vcmask 261120
    %v460 = vsel %vm458, %v446, 0
    %462 = vmatprep.subr.mxu0 0.0
    %463 = vmatpush1.msra.mxu0 0.0
    %464 = vmatprep.subr.mxu0 0.0
    %465 = vmatpush1.msra.mxu0 0.0
    %466 = vmatprep.subr.mxu0 0.0
    %467 = vmatpush1.msra.mxu0 0.0
    %468 = vmatprep.subr.mxu0 0.0
    %469 = vmatpush1.msra.mxu0 0.0
    %470 = vmatprep.subr.mxu0 0.0
    %471 = vmatpush1.msra.mxu0 0.0
    %472 = vmatprep.subr.mxu0 0.0
    %473 = vmatpush1.msra.mxu0 0.0
    %474 = vmatprep.subr.mxu0 0.0
    %475 = vmatpush1.msra.mxu0 0.0
    %476 = vmatprep.subr.mxu0 0.0
    %477 = vmatpush1.msra.mxu0 0.0
    %478 = vmatprep.subr.mxu0 0.0
    %479 = vmatpush1.msra.mxu0 0.0
    %480 = vmatprep.subr.mxu0 0.0
    %481 = vmatpush1.msra.mxu0 0.0
    %482 = vmatprep.subr.mxu0 0.0
    %483 = vmatpush1.msra.mxu0 0.0
    %484 = vmatprep.subr.mxu0 0.0
    %485 = vmatpush1.msra.mxu0 0.0
    %486 = vmatprep.subr.mxu0 0.0
    %487 = vmatpush1.msra.mxu0 %v450
    %488 = vmatprep.subr.mxu0 0.0
    %489 = vmatpush1.msra.mxu0 %v449
    %490 = vmatprep.subr.mxu0 0.0
    %491 = vmatpush1.msra.mxu0 %v448
    %492 = vmatprep.subr.mxu0 0.0
    %493 = vmatpush1.msra.mxu0 %v447
    %494 = vmatprep.subr.mxu0 0.0
    %495 = vmatpush2.msra.mxu0 0.0
    %496 = vmatprep.subr.mxu0 0.0
    %497 = vmatpush2.msra.mxu0 0.0
    %498 = vmatprep.subr.mxu0 0.0
    %499 = vmatpush2.msra.mxu0 0.0
    %500 = vmatprep.subr.mxu0 0.0
    %501 = vmatpush2.msra.mxu0 0.0
    %502 = vmatprep.subr.mxu0 0.0
    %503 = vmatpush2.msra.mxu0 0.0
    %504 = vmatprep.subr.mxu0 0.0
    %505 = vmatpush2.msra.mxu0 0.0
    %506 = vmatprep.subr.mxu0 0.0
    %507 = vmatpush2.msra.mxu0 0.0
    %508 = vmatprep.subr.mxu0 0.0
    %509 = vmatpush2.msra.mxu0 0.0
    %510 = vmatprep.subr.mxu0 0.0
    %511 = vmatpush2.msra.mxu0 0.0
    %512 = vmatprep.subr.mxu0 0.0
    %513 = vmatpush2.msra.mxu0 0.0
    %514 = vmatprep.subr.mxu0 0.0
    %515 = vmatpush2.msra.mxu0 0.0
    %516 = vmatprep.subr.mxu0 0.0
    %517 = vmatpush2.msra.mxu0 0.0
    %518 = vmatprep.subr.mxu0 0.0
    %519 = vmatpush2.msra.mxu0 0.0
    %520 = vmatprep.subr.mxu0 0.0
    %521 = vmatpush2.msra.mxu0 0.0
    %522 = vmatprep.subr.mxu0 0.0
    %523 = vmatpush2.msra.mxu0 0.0
    %524 = vmatprep.subr.mxu0 0.0
    %525 = vmatpush2.msra.mxu0 0.0
    %526 = vmatprep.mubr.f32.mxu0 0.0
    %527 = vmatmul.mubr.f32.gmra.mxu0 %v460
    %v528 = vpop.f32.mrf.mxu0
    %v529 = vadd.f32 %v456, %v528
    %v530 = vpop.f32.mrf.mxu0
    %531 = vdwg.mxu0
    %vm532 = vcmask 64512
    %533 = vst.msk [vmem:[#allocation5] sm:$0xff] %vm532, %v529
    // Predicated region
    $region50: #{tpu_custom_call.1} parent=1 // pred_check
      _
    $region51: #{tpu_custom_call.1} parent=1 // pred_check_branch
      %535 = sbr.rel (0) target = $region53
    $region52: #{tpu_custom_call.1} parent=1 // pred_region
      %s537 = ssub.s32 128, 128
      %538 = vsyncadd [#allocation4], %s537
      %s540 = sshll.u32 [#allocation5], 4
      %s541 = int_to_ptr.vmem [resolvable:$true] %s540
      %543 = dma.vmem_to_hbm [thread:$0]  %s541, 128, %s11, [#allocation4]
    $region53: #{tpu_custom_call.1} parent=1 // pred_fallthru
      _
    // Predicated region
    $region54: #{tpu_custom_call.1} parent=1 // pred_check
      _
    $region55: #{tpu_custom_call.1} parent=1 // pred_check_branch
      %545 = sbr.rel (0) target = $region57
    $region56: #{tpu_custom_call.1} parent=1 // pred_region
      %546 = dma.done [#allocation4], 128
    $region57: #{tpu_custom_call.1} parent=1 // pred_fallthru
      _
    %547 = vsyncpa [#allocation3], 1
    %548 = vsyncpa [#allocation4], 1

</llo_original>
